<compile_context>
chip_gen: v7x
topology: tpu7x:2x2x1
jax: 0.10.0
libtpu: 0.0.40
codegen_flags: <defaults>
</compile_context>

<pallas_src>
import functools

import jax
import jax.numpy as jnp
import numpy as np
from jax.experimental import pallas as pl
from jax.experimental.pallas import tpu as pltpu

# Full-precision f32 matmuls for the host-side weight-fusion chain and the
# pure-JAX reference, so the correctness check below is meaningful.
jax.config.update("jax_default_matmul_precision", "highest")

LANE = 128
SUBLANE = 8
MAX_TILE_B = 512


def _round_up(x, m):
    return (x + m - 1) // m * m


# ----------------------- graph / parameter construction (glue) ---------------

def make_mask(num_vertices, edge_list):
    mask = np.zeros((num_vertices, num_vertices), dtype=np.float32)
    for i, j in edge_list:
        mask[i, j] = 1.0
        mask[j, i] = 1.0
    for i in range(num_vertices):
        mask[i, i] = 1.0
    return jnp.asarray(mask)


def make_pool_matrix(vertices, coarsening):
    # GraphPool.make_matrix: (len(coarsening), vertices)
    m = np.zeros((len(coarsening), vertices), dtype=np.float32)
    for i, group in enumerate(coarsening):
        for j in group:
            m[i, j] = 1.0 / float(len(group))
    return jnp.asarray(m)


def make_reverse_pool_matrix(vertices, coarsening):
    # GraphReversePool.make_matrix: (vertices, len(coarsening))
    m = np.zeros((vertices, len(coarsening)), dtype=np.float32)
    for j, group in enumerate(coarsening):
        for i in group:
            m[i, j] = 1.0
    return jnp.asarray(m)


def init_graph_linear_weight(key, vertices, mask, bound=0.001):
    # GraphLinearLayer.__init__: uniform(-bound, bound), then masked.
    w = jax.random.uniform(key, (vertices, vertices), jnp.float32,
                           minval=-bound, maxval=bound)
    return w * mask


# --------------------------- one-time weight fusion ---------------------------

def fuse_and_pad_weight(w0, mask0, pool_m, w1, mask1, rev_pool_m, w2):
    """Fuse the 5 linear operators into one weight (depends only on params).

    y = x @ W0m^T @ P^T @ W1m^T @ R^T @ W2m^T = x @ (W2m @ R @ W1m @ P @ W0m)^T
    Returned weight is zero-padded to a multiple of 8 on both axes so the
    kernel's sublane axis is aligned.  Call once per weight update, not per
    forward.
    """
    w0m = w0 * mask0
    w1m = w1 * mask1
    w2m = w2 * mask0
    w_fused = w2m @ rev_pool_m @ w1m @ pool_m @ w0m       # (V, V)
    V = w_fused.shape[0]
    Vp = _round_up(V, SUBLANE)
    return jnp.zeros((Vp, Vp), jnp.float32).at[:V, :V].set(
        w_fused.astype(jnp.float32))


# ------------------------------- Pallas kernel --------------------------------

def _make_gcn_kernel(vp: int, use_mxu: bool):
    """out^T tile = W_fused @ x^T tile.

    w_ref : (vp, vp)       fused, zero-padded weight (f32, grid-invariant)
    xt_ref: (vp, TILE_B)   transposed activations (batch on the lane axis)
    o_ref : (vp, TILE_B)   transposed output tile (lane-dense stores)
    """
    def kernel(w_ref, xt_ref, o_ref):
        x = xt_ref[...].astype(jnp.float32)               # (vp, TILE_B)
        w = w_ref[...]                                    # (vp, vp) f32
        if use_mxu:
            y = jnp.dot(w, x, preferred_element_type=jnp.float32,
                        precision=jax.lax.Precision.HIGHEST)
        else:
            # vp <= 8: the contraction is just vp VPU FMAs (exact f32);
            # cheaper and more robust than driving the MXU with K=8.
            y = w[:, 0:1] * x[0:1, :]
            for k in range(1, vp):
                y = y + w[:, k:k + 1] * x[k:k + 1, :]
        o_ref[...] = y.astype(o_ref.dtype)
    return kernel


@functools.partial(jax.jit, static_argnames=("stream_dtype",))
def gcn_forward_fused(x, w_p, *, stream_dtype=jnp.float32):
    """x: (B, V) activations.  w_p: (Vp, Vp) pre-fused padded f32 weight."""
    B, V = x.shape
    Vp = w_p.shape[0]

    # Large lane-dense batch tiles (>=128, <=512); padding waste < one tile.
    tile_b = min(MAX_TILE_B, _round_up(B, LANE))
    Bp = _round_up(B, tile_b)

    # Transposed, sublane-padded activations: batch on the 128-lane axis,
    # vertices (V -> Vp=8) on sublanes.  This is layout plumbing only; it
    # avoids the previous 6->128 lane padding in HBM entirely.
    xt = jnp.zeros((Vp, Bp), stream_dtype).at[:V, :B].set(
        x.T.astype(stream_dtype))

    kernel = _make_gcn_kernel(Vp, use_mxu=Vp > SUBLANE)
    itemsize = jnp.dtype(stream_dtype).itemsize

    out_t = pl.pallas_call(
        kernel,
        out_shape=jax.ShapeDtypeStruct((Vp, Bp), stream_dtype),
        grid=(Bp // tile_b,),
        in_specs=[
            # Tiny fused weight: grid-invariant, resident in VMEM (256 B @ V=6).
            pl.BlockSpec((Vp, Vp), lambda i: (0, 0)),
            # Lane-dense batch tile of transposed activations.
            pl.BlockSpec((Vp, tile_b), lambda i: (0, i)),
        ],
        out_specs=pl.BlockSpec((Vp, tile_b), lambda i: (0, i)),
        compiler_params=pltpu.CompilerParams(
            # Batch grid steps are independent -> shard across v7x's 2 TCs.
            dimension_semantics=("parallel",)),
        cost_estimate=pl.CostEstimate(        # real work, not padded work
            flops=2 * B * V * V,
            bytes_accessed=itemsize * 2 * B * V + 4 * V * V,
            transcendentals=0),
    )(w_p, xt)

    return out_t[:V, :B].T.astype(x.dtype)


# --------------------------- reference (pure JAX) ------------------------------

def gcn_reference(x, w0, mask0, pool_m, w1, mask1, rev_pool_m, w2):
    h = x @ (w0 * mask0).T
    h = h @ pool_m.T
    h = h @ (w1 * mask1).T
    h = h @ rev_pool_m.T
    h = h @ (w2 * mask0).T
    return h


# ------------------------------------ main -------------------------------------

if __name__ == "__main__":
    # Input graph: 6 vertices (contraction0 = [[0,1,2],[3,4,5]] implies 6).
    vertices = 6
    edge_list = [(0, 1), (1, 2), (2, 3), (3, 4), (4, 5), (0, 5)]
    coarsening = [[0, 1, 2], [3, 4, 5]]

    mask0 = make_mask(vertices, edge_list)          # (6, 6)
    mask1 = make_mask(2, [])                        # (2, 2) -> identity

    key = jax.random.PRNGKey(0)
    k0, k1, k2, kx = jax.random.split(key, 4)

    w0 = init_graph_linear_weight(k0, vertices, mask0)           # layer0
    w1 = init_graph_linear_weight(k1, 2, mask1)                  # layer1
    w2 = init_graph_linear_weight(k2, vertices, mask0)           # layer2
    pool_m = make_pool_matrix(vertices, coarsening)              # (2, 6)
    rev_pool_m = make_reverse_pool_matrix(vertices, coarsening)  # (6, 2)

    # x: (batch, vertices) — small demo shape.
    B = 8
    x = jax.random.normal(kx, (B, vertices), dtype=jnp.float32)

    # One-time weight fusion (hoisted out of the per-forward path).
    w_p = jax.block_until_ready(
        fuse_and_pad_weight(w0, mask0, pool_m, w1, mask1, rev_pool_m, w2))

    ref = gcn_reference(x, w0, mask0, pool_m, w1, mask1, rev_pool_m, w2)

    # f32 streaming path: exact-f32 contraction, strict check.
    out = jax.block_until_ready(gcn_forward_fused(x, w_p))
    np.testing.assert_allclose(np.asarray(out), np.asarray(ref),
                               rtol=1e-4, atol=1e-11)

    # bf16 streaming path (halves HBM bytes): loose check (input quantization).
    out_bf16 = jax.block_until_ready(
        gcn_forward_fused(x, w_p, stream_dtype=jnp.bfloat16))
    np.testing.assert_allclose(np.asarray(out_bf16, dtype=np.float32),
                               np.asarray(ref), rtol=1e-1, atol=1e-9)

    print("KERNEL_OK")
</pallas_src>

<mosaic_0001>
module attributes {stable_mosaic.version = 11 : i64} {
  func.func @kernel(%arg0: i32, %arg1: memref<8x8xf32, #tpu.memory_space<vmem>>, %arg2: memref<8x128xf32, #tpu.memory_space<vmem>>, %arg3: memref<8x128xf32, #tpu.memory_space<vmem>>) attributes {dimension_semantics = [#tpu.dimension_semantics<parallel>], iteration_bounds = array<i64: 1>, scalar_prefetch = 0 : i64, scratch_operands = 0 : i64, tpu.core_type = #tpu.core_type<tc>, window_params = [{pipeline_mode = #tpu.pipeline_mode<synchronous>, transform_indices = @transform_0, window_bounds = array<i64: 8, 8>}, {transform_indices = @transform_1, window_bounds = array<i64: 8, 128>}, {transform_indices = @transform_2, window_bounds = array<i64: 8, 128>}]} {
    %c0 = arith.constant 0 : index
    %c0_0 = arith.constant 0 : index
    %0 = vector.load %arg2[%c0, %c0_0] : memref<8x128xf32, #tpu.memory_space<vmem>>, vector<8x128xf32>
    %c0_1 = arith.constant 0 : index
    %c0_2 = arith.constant 0 : index
    %1 = vector.load %arg1[%c0_1, %c0_2] : memref<8x8xf32, #tpu.memory_space<vmem>>, vector<8x8xf32>
    %2 = vector.extract_strided_slice %1 {offsets = [0, 0], sizes = [8, 1], strides = [1, 1]} : vector<8x8xf32> to vector<8x1xf32>
    %3 = vector.extract_strided_slice %0 {offsets = [0, 0], sizes = [1, 128], strides = [1, 1]} : vector<8x128xf32> to vector<1x128xf32>
    %4 = vector.broadcast %2 : vector<8x1xf32> to vector<8x128xf32>
    %5 = vector.broadcast %3 : vector<1x128xf32> to vector<8x128xf32>
    %6 = arith.mulf %4, %5 : vector<8x128xf32>
    %7 = vector.extract_strided_slice %1 {offsets = [0, 1], sizes = [8, 1], strides = [1, 1]} : vector<8x8xf32> to vector<8x1xf32>
    %8 = vector.extract_strided_slice %0 {offsets = [1, 0], sizes = [1, 128], strides = [1, 1]} : vector<8x128xf32> to vector<1x128xf32>
    %9 = vector.broadcast %7 : vector<8x1xf32> to vector<8x128xf32>
    %10 = vector.broadcast %8 : vector<1x128xf32> to vector<8x128xf32>
    %11 = arith.mulf %9, %10 : vector<8x128xf32>
    %12 = arith.addf %6, %11 : vector<8x128xf32>
    %13 = vector.extract_strided_slice %1 {offsets = [0, 2], sizes = [8, 1], strides = [1, 1]} : vector<8x8xf32> to vector<8x1xf32>
    %14 = vector.extract_strided_slice %0 {offsets = [2, 0], sizes = [1, 128], strides = [1, 1]} : vector<8x128xf32> to vector<1x128xf32>
    %15 = vector.broadcast %13 : vector<8x1xf32> to vector<8x128xf32>
    %16 = vector.broadcast %14 : vector<1x128xf32> to vector<8x128xf32>
    %17 = arith.mulf %15, %16 : vector<8x128xf32>
    %18 = arith.addf %12, %17 : vector<8x128xf32>
    %19 = vector.extract_strided_slice %1 {offsets = [0, 3], sizes = [8, 1], strides = [1, 1]} : vector<8x8xf32> to vector<8x1xf32>
    %20 = vector.extract_strided_slice %0 {offsets = [3, 0], sizes = [1, 128], strides = [1, 1]} : vector<8x128xf32> to vector<1x128xf32>
    %21 = vector.broadcast %19 : vector<8x1xf32> to vector<8x128xf32>
    %22 = vector.broadcast %20 : vector<1x128xf32> to vector<8x128xf32>
    %23 = arith.mulf %21, %22 : vector<8x128xf32>
    %24 = arith.addf %18, %23 : vector<8x128xf32>
    %25 = vector.extract_strided_slice %1 {offsets = [0, 4], sizes = [8, 1], strides = [1, 1]} : vector<8x8xf32> to vector<8x1xf32>
    %26 = vector.extract_strided_slice %0 {offsets = [4, 0], sizes = [1, 128], strides = [1, 1]} : vector<8x128xf32> to vector<1x128xf32>
    %27 = vector.broadcast %25 : vector<8x1xf32> to vector<8x128xf32>
    %28 = vector.broadcast %26 : vector<1x128xf32> to vector<8x128xf32>
    %29 = arith.mulf %27, %28 : vector<8x128xf32>
    %30 = arith.addf %24, %29 : vector<8x128xf32>
    %31 = vector.extract_strided_slice %1 {offsets = [0, 5], sizes = [8, 1], strides = [1, 1]} : vector<8x8xf32> to vector<8x1xf32>
    %32 = vector.extract_strided_slice %0 {offsets = [5, 0], sizes = [1, 128], strides = [1, 1]} : vector<8x128xf32> to vector<1x128xf32>
    %33 = vector.broadcast %31 : vector<8x1xf32> to vector<8x128xf32>
    %34 = vector.broadcast %32 : vector<1x128xf32> to vector<8x128xf32>
    %35 = arith.mulf %33, %34 : vector<8x128xf32>
    %36 = arith.addf %30, %35 : vector<8x128xf32>
    %37 = vector.extract_strided_slice %1 {offsets = [0, 6], sizes = [8, 1], strides = [1, 1]} : vector<8x8xf32> to vector<8x1xf32>
    %38 = vector.extract_strided_slice %0 {offsets = [6, 0], sizes = [1, 128], strides = [1, 1]} : vector<8x128xf32> to vector<1x128xf32>
    %39 = vector.broadcast %37 : vector<8x1xf32> to vector<8x128xf32>
    %40 = vector.broadcast %38 : vector<1x128xf32> to vector<8x128xf32>
    %41 = arith.mulf %39, %40 : vector<8x128xf32>
    %42 = arith.addf %36, %41 : vector<8x128xf32>
    %43 = vector.extract_strided_slice %1 {offsets = [0, 7], sizes = [8, 1], strides = [1, 1]} : vector<8x8xf32> to vector<8x1xf32>
    %44 = vector.extract_strided_slice %0 {offsets = [7, 0], sizes = [1, 128], strides = [1, 1]} : vector<8x128xf32> to vector<1x128xf32>
    %45 = vector.broadcast %43 : vector<8x1xf32> to vector<8x128xf32>
    %46 = vector.broadcast %44 : vector<1x128xf32> to vector<8x128xf32>
    %47 = arith.mulf %45, %46 : vector<8x128xf32>
    %48 = arith.addf %42, %47 : vector<8x128xf32>
    %c0_3 = arith.constant 0 : index
    %c0_4 = arith.constant 0 : index
    %49 = vector.load %arg3[%c0_3, %c0_4] : memref<8x128xf32, #tpu.memory_space<vmem>>, vector<8x128xf32>
    tpu.vector_store %arg3[%c0_3, %c0_4], %48 {strides = array<i32>} : memref<8x128xf32, #tpu.memory_space<vmem>>, vector<8x128xf32>,
    return
  }
  func.func @transform_0(%arg0: i32) -> (i32, i32) {
    %c0_i32 = arith.constant 0 : i32
    %c0_i32_0 = arith.constant 0 : i32
    %c0_i32_1 = arith.constant 0 : i32
    return %c0_i32, %c0_i32_0 : i32, i32
  }
  func.func @transform_1(%arg0: i32) -> (i32, i32) {
    %c0_i32 = arith.constant 0 : i32
    %c0_i32_0 = arith.constant 0 : i32
    return %c0_i32, %arg0 : i32, i32
  }
  func.func @transform_2(%arg0: i32) -> (i32, i32) {
    %c0_i32 = arith.constant 0 : i32
    %c0_i32_0 = arith.constant 0 : i32
    return %c0_i32, %arg0 : i32, i32
  }
}

</mosaic_0001>

<llo_original>
// kernel: gcn_forward_fused.1
$region0: #{gcn_forward_fused.1}
  #allocation0 [shape = 'u32[]', space=smem, size = 0x4, offset = 0x4, fixed_abs, tag = 'smem constant byte address 0x4 - core index']
  #allocation1 [shape = 'u32[144,128]{1,0:T(1,128)}', space=vmem, size = 0x12000, scoped, tag = 'internal scratch']
  %s0 = inlined_call_operand.vmem [shape: f32[8,8], index: 0, kind: input, shape index: {}]
  %s1 = inlined_call_operand.vmem [shape: f32[8,128], index: 1, kind: input, shape index: {}]
  %s2 = inlined_call_operand.vmem [shape: f32[8,128], index: 2, kind: output, shape index: {}]
  %s3 = sld [smem:[#allocation0]]
  $region18: #{gcn_forward_fused.1} parent=0
    _
  %s5 = ssub.s32 1, %s3
  %s6 = scalar_select 0, %s5, %s3
  // Predicated region
  $region2: #{gcn_forward_fused.1} parent=0 // pred_check
    _
  $region3: #{gcn_forward_fused.1} parent=0 // pred_check_branch
    %8 = sbr.rel (0) target = $region5
  $region4: #{gcn_forward_fused.1} parent=0 // pred_region
    _
  $region5: #{gcn_forward_fused.1} parent=0 // pred_fallthru
    _
  // Predicated region
  $region6: #{gcn_forward_fused.1} parent=0 // pred_check
    _
  $region7: #{gcn_forward_fused.1} parent=0 // pred_check_branch
    %10 = sbr.rel (0) target = $region9
  $region8: #{gcn_forward_fused.1} parent=0 // pred_region
    _
  $region9: #{gcn_forward_fused.1} parent=0 // pred_fallthru
    _
  %v11 = vld [vmem:[%s1] sm:$0xff]
  %v12 = vld [vmem:[%s0] sm:$0xff]
  %14 = vset.pattern.permute.xlu0 0
  %15 = vperm.xlu0 %14, %v12
  %v16 = vpop.permute.xlu0 %15
  %v18 = vlaneseq
  %v19 = vshrl.u32 %v18, 7
  %v20 = vsub.s32 0, %v19
  %v21 = vrot.slane %v11, %v20
  %v22 = vmul.f32 %v16, %v21
  %23 = vset.pattern.permute.xlu0 1
  %24 = vperm.xlu0 %23, %v12
  %v25 = vpop.permute.xlu0 %24
  %v27 = vlaneseq
  %v28 = vshrl.u32 %v27, 7
  %v29 = vsub.s32 1, %v28
  %v30 = vrot.slane %v11, %v29
  %v31 = vmul.f32 %v25, %v30
  %v32 = vadd.f32 %v22, %v31
  %33 = vset.pattern.permute.xlu0 2
  %34 = vperm.xlu0 %33, %v12
  %v35 = vpop.permute.xlu0 %34
  %v37 = vlaneseq
  %v38 = vshrl.u32 %v37, 7
  %v39 = vsub.s32 2, %v38
  %v40 = vrot.slane %v11, %v39
  %v41 = vmul.f32 %v35, %v40
  %v42 = vadd.f32 %v32, %v41
  %43 = vset.pattern.permute.xlu0 3
  %44 = vperm.xlu0 %43, %v12
  %v45 = vpop.permute.xlu0 %44
  %v47 = vlaneseq
  %v48 = vshrl.u32 %v47, 7
  %v49 = vsub.s32 3, %v48
  %v50 = vrot.slane %v11, %v49
  %v51 = vmul.f32 %v45, %v50
  %v52 = vadd.f32 %v42, %v51
  %53 = vset.pattern.permute.xlu0 4
  %54 = vperm.xlu0 %53, %v12
  %v55 = vpop.permute.xlu0 %54
  %v57 = vlaneseq
  %v58 = vshrl.u32 %v57, 7
  %v59 = vsub.s32 4, %v58
  %v60 = vrot.slane %v11, %v59
  %v61 = vmul.f32 %v55, %v60
  %v62 = vadd.f32 %v52, %v61
  %63 = vset.pattern.permute.xlu0 5
  %64 = vperm.xlu0 %63, %v12
  %v65 = vpop.permute.xlu0 %64
  %v67 = vlaneseq
  %v68 = vshrl.u32 %v67, 7
  %v69 = vsub.s32 5, %v68
  %v70 = vrot.slane %v11, %v69
  %v71 = vmul.f32 %v65, %v70
  %v72 = vadd.f32 %v62, %v71
  %73 = vset.pattern.permute.xlu0 6
  %74 = vperm.xlu0 %73, %v12
  %v75 = vpop.permute.xlu0 %74
  %v77 = vlaneseq
  %v78 = vshrl.u32 %v77, 7
  %v79 = vsub.s32 6, %v78
  %v80 = vrot.slane %v11, %v79
  %v81 = vmul.f32 %v75, %v80
  %v82 = vadd.f32 %v72, %v81
  %83 = vset.pattern.permute.xlu0 7
  %84 = vperm.xlu0 %83, %v12
  %v85 = vpop.permute.xlu0 %84
  %v87 = vlaneseq
  %v88 = vshrl.u32 %v87, 7
  %v89 = vsub.s32 7, %v88
  %v90 = vrot.slane %v11, %v89
  %v91 = vmul.f32 %v85, %v90
  %v92 = vadd.f32 %v82, %v91
  %93 = vst [vmem:[%s2] sm:$0xff] %v92
  // Predicated region
  $region10: #{gcn_forward_fused.1} parent=0 // pred_check
    _
  $region11: #{gcn_forward_fused.1} parent=0 // pred_check_branch
    %95 = sbr.rel (0) target = $region13
  $region12: #{gcn_forward_fused.1} parent=0 // pred_region
    _
  $region13: #{gcn_forward_fused.1} parent=0 // pred_fallthru
    _
  // Predicated region
  $region14: #{gcn_forward_fused.1} parent=0 // pred_check
    _
  $region15: #{gcn_forward_fused.1} parent=0 // pred_check_branch
    %97 = sbr.rel (0) target = $region17
  $region16: #{gcn_forward_fused.1} parent=0 // pred_region
    _
  $region17: #{gcn_forward_fused.1} parent=0 // pred_fallthru
    _

</llo_original>
